<compile_context>
chip_gen: v7x
topology: tpu7x:2x2x1
jax: 0.10.0
libtpu: 0.0.40
codegen_flags: <defaults>
</compile_context>

<pallas_src>
import jax
import jax.numpy as jnp
from jax.experimental import pallas as pl
from jax.experimental.pallas import tpu as pltpu


def _round_up(x, m):
    return ((x + m - 1) // m) * m


def _choose_tn(cout):
    # 256-wide output tiles (full v6e/v7x MXU width) when that costs no extra Cout padding.
    return 256 if _round_up(cout, 256) == _round_up(cout, 128) else 128


def _pick_th(ho, wo, min_row_tiles=1):
    """Largest divisor of Ho keeping per-tile GEMM rows <= ~256 and >= min_row_tiles tiles."""
    target = max(1, 256 // max(wo, 1))
    target = min(target, max(1, ho // max(min_row_tiles, 1)))
    th = 1
    for d in range(1, ho + 1):
        if ho % d == 0 and d <= target:
            th = d
    return th


# ----------------------------- bn1 + relu1 kernel ---------------------------

def _bnrelu_kernel(x_ref, s_ref, b_ref, o_ref):
    o_ref[...] = jnp.maximum(
        x_ref[...].astype(jnp.float32) * s_ref[...] + b_ref[...], 0.0
    ).astype(o_ref.dtype)


def bn_relu(x_nhwc, scale, shift):
    """relu(scale * x + shift), channels-last, bf16 in / bf16 out, lane-dense blocks."""
    N, H, W, C = x_nhwc.shape
    L = N * H * W * C
    scale = scale.astype(jnp.float32)
    shift = shift.astype(jnp.float32)
    if C <= 128 and 128 % C == 0 and L % 128 == 0:
        # Lane-dense view: each 128-lane row holds 128//C whole pixels, so the
        # per-channel scale/shift simply tile across the lanes (review item: avoid
        # masked sub-128-lane vld/vst for narrow channel counts).
        xv = x_nhwc.reshape(L // 128, 128)
        sv = jnp.tile(scale, 128 // C).reshape(1, 128)
        bv = jnp.tile(shift, 128 // C).reshape(1, 128)
    else:
        xv = x_nhwc.reshape(N * H * W, C)
        sv, bv = scale.reshape(1, C), shift.reshape(1, C)
    R, Cc = xv.shape
    TR = R if R <= 1024 else 1024
    out = pl.pallas_call(
        _bnrelu_kernel,
        grid=(pl.cdiv(R, TR),),
        in_specs=[pl.BlockSpec((TR, Cc), lambda i: (i, 0)),
                  pl.BlockSpec((1, Cc), lambda i: (0, 0)),
                  pl.BlockSpec((1, Cc), lambda i: (0, 0))],
        out_specs=pl.BlockSpec((TR, Cc), lambda i: (i, 0)),
        out_shape=jax.ShapeDtypeStruct((R, Cc), jnp.bfloat16),
        compiler_params=pltpu.CompilerParams(dimension_semantics=("parallel",)),
    )(xv, sv, bv)
    return out.reshape(N, H, W, C)


# ---------------------------- direct (halo-band) conv -----------------------

def _phase_split(x, s, hq_min, wq_min):
    """(N,Hp,Wp,C) -> (N, s*s, Hq, Wq, C) with phase (rh, rw) at index rh*s+rw:
       out[n, rh*s+rw, p, q, :] = x_padded[n, p*s+rh, q*s+rw, :].
       For s == 1 this is a free reshape."""
    N, Hp, Wp, C = x.shape
    Hq = max(-(-Hp // s), hq_min)
    Wq = max(-(-Wp // s), wq_min)
    x = jnp.pad(x, ((0, 0), (0, Hq * s - Hp), (0, Wq * s - Wp), (0, 0)))
    x = x.reshape(N, Hq, s, Wq, s, C).transpose(0, 2, 4, 1, 3, 5)
    return x.reshape(N, s * s, Hq, Wq, C)


def _direct_conv(a_ph, w_taps, taps, Ho, Wo, TN, *, out_dtype,
                 scale=None, shift=None, residual=None):
    """out[n,ho,wo,co] = sum_t a_ph[n, phase_t, ho+roff_t, wo+coff_t, :] @ w_taps[t,:,co]
    with an optional fused per-Cout BN(scale,shift)+ReLU or residual-add epilogue.

    a_ph:   (N, P, Hq, Wq, Cin)  bf16, already activated and zero padded.
    w_taps: (T, Cin, Cout_p)     bf16 (Cout_p a multiple of TN, lane-dense).
    """
    N, P, Hq, Wq, Cin = a_ph.shape
    T, Cin_w, Cout_p = w_taps.shape
    assert Cin_w == Cin and len(taps) == T and Cout_p % TN == 0
    J = Cout_p // TN
    min_rt = 1 if N * J >= 2 else 2          # keep >=2 parallel blocks for dual-TC chips
    TH = _pick_th(Ho, Wo, min_rt)
    RT = Ho // TH
    band_rows = TH + max(r for _, r, _ in taps)
    assert band_rows <= Hq and Wo + max(c for _, _, c in taps) <= Wq

    mode = "bnrelu" if scale is not None else ("residual" if residual is not None else "plain")

    def kernel(*refs):
        if mode == "bnrelu":
            a_hbm, w_ref, s_ref, b_ref, o_ref, band, sem = refs
        elif mode == "residual":
            a_hbm, w_ref, r_ref, o_ref, band, sem = refs
        else:
            a_hbm, w_ref, o_ref, band, sem = refs
        m = pl.program_id(1)
        n, rt = m // RT, m % RT
        # One halo row band per spatial tile, DMA'd straight from HBM (no im2col).
        cp = pltpu.make_async_copy(
            a_hbm.at[n, :, pl.ds(rt * TH, band_rows), :, :], band, sem)
        cp.start()
        cp.wait()
        acc = jnp.zeros((TH * Wo, TN), jnp.float32)
        for t, (ph, ro, co) in enumerate(taps):   # unrolled: T shifted MXU matmuls
            patch = band[ph, ro:ro + TH, co:co + Wo, :]
            acc = acc + jnp.dot(patch.reshape(TH * Wo, Cin), w_ref[t],
                                preferred_element_type=jnp.float32)
        if mode == "bnrelu":
            acc = jnp.maximum(acc * s_ref[...] + b_ref[...], 0.0)
        elif mode == "residual":
            acc = acc + r_ref[...].reshape(TH * Wo, TN).astype(jnp.float32)
        o_ref[...] = acc.reshape(TH, Wo, TN).astype(o_ref.dtype)

    in_specs = [pl.BlockSpec(memory_space=pl.ANY),               # activations stay in HBM
                pl.BlockSpec((T, Cin, TN), lambda j, m: (0, 0, j))]
    args = [a_ph, w_taps]
    if mode == "bnrelu":
        in_specs += [pl.BlockSpec((1, TN), lambda j, m: (0, j)),
                     pl.BlockSpec((1, TN), lambda j, m: (0, j))]
        args += [scale.reshape(1, Cout_p), shift.reshape(1, Cout_p)]
    elif mode == "residual":
        in_specs += [pl.BlockSpec((None, TH, Wo, TN),
                                  lambda j, m: (m // RT, m % RT, 0, j))]
        args += [residual]

    flops = 2 * N * Ho * Wo * Cout_p * Cin * T
    bytes_accessed = (a_ph.size + w_taps.size) * 2 \
        + N * Ho * Wo * Cout_p * jnp.dtype(out_dtype).itemsize \
        + (residual.size * 2 if residual is not None else 0)

    return pl.pallas_call(
        kernel,
        grid=(J, N * RT),                       # Cout tile slow -> weights fetched ~once per tile
        in_specs=in_specs,
        out_specs=pl.BlockSpec((None, TH, Wo, TN),
                               lambda j, m: (m // RT, m % RT, 0, j)),
        out_shape=jax.ShapeDtypeStruct((N, Ho, Wo, Cout_p), out_dtype),
        scratch_shapes=[pltpu.VMEM((P, band_rows, Wq, Cin), a_ph.dtype),
                        pltpu.SemaphoreType.DMA],
        compiler_params=pltpu.CompilerParams(
            dimension_semantics=("parallel", "parallel")),
        cost_estimate=pl.CostEstimate(flops=flops, transcendentals=0,
                                      bytes_accessed=bytes_accessed),
    )(*args)


def conv3x3(a, w_taps, stride, TN, *, out_dtype, scale=None, shift=None, residual=None):
    """3x3 conv (pad=1) on an already-activated NHWC input, via the direct kernel."""
    N, H, W, C = a.shape
    Cin_p = w_taps.shape[1]
    s = stride
    Ho = (H - 1) // s + 1
    Wo = (W - 1) // s + 1
    taps = [((kh % s) * s + (kw % s), kh // s, kw // s)
            for kh in range(3) for kw in range(3)]
    # Zero-pad AFTER activation (border taps must be true zeros); channel pad to the
    # packing-friendly Cin the weights were prepared for (zeros are free in the dot).
    a_pad = jnp.pad(a, ((0, 0), (1, 1), (1, 1), (0, Cin_p - C)))
    a_ph = _phase_split(a_pad, s,
                        hq_min=Ho + max(r for _, r, _ in taps),
                        wq_min=Wo + max(c for _, _, c in taps))
    return _direct_conv(a_ph, w_taps, taps, Ho, Wo, TN, out_dtype=out_dtype,
                        scale=scale, shift=shift, residual=residual)


def conv1x1(a, w_tap, stride, TN, *, out_dtype):
    """1x1 strided shortcut conv: same direct kernel with a single tap."""
    N, H, W, C = a.shape
    Cin_p = w_tap.shape[1]
    a_s = a[:, ::stride, ::stride, :]
    if Cin_p != C:
        a_s = jnp.pad(a_s, ((0, 0), (0, 0), (0, 0), (0, Cin_p - C)))
    N, Ho, Wo, _ = a_s.shape
    a_ph = a_s.reshape(N, 1, Ho, Wo, Cin_p)
    return _direct_conv(a_ph, w_tap, [(0, 0, 0)], Ho, Wo, TN, out_dtype=out_dtype)


# ------------------------- hoisted parameter preparation --------------------

def _bn_fold(bn, eps=1e-5):
    scale = bn["gamma"] / jnp.sqrt(bn["var"] + eps)
    shift = bn["beta"] - bn["mean"] * scale
    return scale, shift


def prepare_block_params(params, stride, equal_in_out, eps=1e-5):
    """Fold BN and repack / pad conv weights once per model (hoisted out of forward)."""
    if equal_in_out:
        assert stride == 1, "identity shortcut requires stride == 1"
    s1, b1 = _bn_fold(params["bn1"], eps)
    s2, b2 = _bn_fold(params["bn2"], eps)
    Cout, Cin = params["w1"].shape[:2]
    TN = _choose_tn(Cout)
    Cout_p = _round_up(Cout, TN)
    Cin_p = _round_up(Cin, 8)

    def pack3x3(w_oihw, cin, cin_p):
        co = w_oihw.shape[0]
        w = jnp.transpose(w_oihw, (2, 3, 1, 0)).reshape(9, cin, co)
        return jnp.pad(w, ((0, 0), (0, cin_p - cin), (0, Cout_p - co))).astype(jnp.bfloat16)

    prep = {
        "stride": stride, "equal_in_out": equal_in_out,
        "TN": TN, "Cout": Cout, "Cout_p": Cout_p,
        "s1": s1.astype(jnp.float32), "b1": b1.astype(jnp.float32),
        "s2": jnp.pad(s2, (0, Cout_p - Cout)).astype(jnp.float32),
        "b2": jnp.pad(b2, (0, Cout_p - Cout)).astype(jnp.float32),
        "w1": pack3x3(params["w1"], Cin, Cin_p),
        "w2": pack3x3(params["w2"], Cout, Cout_p),    # conv2 input = channel-padded h
    }
    if not equal_in_out:
        ws = jnp.transpose(params["ws"].reshape(Cout, Cin), (1, 0)).reshape(1, Cin, Cout)
        prep["ws"] = jnp.pad(
            ws, ((0, 0), (0, Cin_p - Cin), (0, Cout_p - Cout))).astype(jnp.bfloat16)
    return prep


# --------------------------------- forward ----------------------------------

def basic_block_forward(x_nchw, prep):
    """Pallas implementation of BasicBlock.forward (eval-mode BN, dropRate=0)."""
    stride, equal_in_out = prep["stride"], prep["equal_in_out"]
    Cout, Cout_p, TN = prep["Cout"], prep["Cout_p"], prep["TN"]
    # Interface transpose + bf16 cast once (hoist outside the residual stack in a full WRN).
    x = jnp.transpose(x_nchw, (0, 2, 3, 1)).astype(jnp.bfloat16)     # NCHW -> NHWC
    a = bn_relu(x, prep["s1"], prep["b1"])                            # relu(bn1(x)), bf16
    # conv1 with bn2+relu fused into its GEMM epilogue.
    h = conv3x3(a, prep["w1"], stride, TN, out_dtype=jnp.bfloat16,
                scale=prep["s2"], shift=prep["b2"])                   # (N, Ho, Wo, Cout_p)
    if equal_in_out:
        residual = jnp.pad(x, ((0, 0), (0, 0), (0, 0), (0, Cout_p - x.shape[-1])))
    else:
        residual = conv1x1(a, prep["ws"], stride, TN, out_dtype=jnp.bfloat16)
    # conv2 with the residual add fused on the f32 accumulator.
    out = conv3x3(h, prep["w2"], 1, TN, out_dtype=jnp.float32, residual=residual)
    out = out[..., :Cout]
    return jnp.transpose(out, (0, 3, 1, 2))                           # NHWC -> NCHW, f32


# ---------------------------- pure-JAX reference ----------------------------

def ref_forward(x_nchw, params, stride, equal_in_out):
    """XLA reference mirroring the kernel's precision policy (bf16 activations /
    weights, f32 accumulation) so the comparison isolates indexing / fusion /
    padding correctness from the deliberate bf16 quantization."""
    xb = jnp.transpose(x_nchw, (0, 2, 3, 1)).astype(jnp.bfloat16)
    x = xb.astype(jnp.float32)
    s1, b1 = _bn_fold(params["bn1"])
    s2, b2 = _bn_fold(params["bn2"])

    def conv(t, w_oihw, st, pad):
        w = jnp.transpose(w_oihw, (2, 3, 1, 0)).astype(jnp.bfloat16).astype(jnp.float32)
        return jax.lax.conv_general_dilated(
            t.astype(jnp.float32), w, (st, st), [(pad, pad), (pad, pad)],
            dimension_numbers=("NHWC", "HWIO", "NHWC"))

    a = jnp.maximum(x * s1 + b1, 0.0).astype(jnp.bfloat16)
    c1 = conv(a, params["w1"], stride, 1)
    h = jnp.maximum(c1 * s2 + b2, 0.0).astype(jnp.bfloat16)
    c2 = conv(h, params["w2"], 1, 1)
    if equal_in_out:
        res = x                                         # bf16-quantized x in f32
    else:
        res = conv(a, params["ws"], stride, 0).astype(jnp.bfloat16).astype(jnp.float32)
    return jnp.transpose(res + c2, (0, 3, 1, 2))


# --------------------------------- params -----------------------------------

def make_params(key, in_planes, out_planes, equal_in_out):
    ks = jax.random.split(key, 8)

    def bn(kg, kb, km, kv, c):
        return {
            "gamma": 1.0 + 0.1 * jax.random.normal(kg, (c,), jnp.float32),
            "beta": 0.1 * jax.random.normal(kb, (c,), jnp.float32),
            "mean": 0.1 * jax.random.normal(km, (c,), jnp.float32),
            "var": 0.5 + jnp.abs(jax.random.normal(kv, (c,), jnp.float32)),
        }

    params = {
        "bn1": bn(ks[0], ks[1], ks[2], ks[3], in_planes),
        "bn2": bn(ks[4], ks[5], ks[6], ks[7], out_planes),
        "w1": 0.2 * jax.random.normal(jax.random.fold_in(key, 10),
                                      (out_planes, in_planes, 3, 3), jnp.float32),
        "w2": 0.2 * jax.random.normal(jax.random.fold_in(key, 11),
                                      (out_planes, out_planes, 3, 3), jnp.float32),
    }
    if not equal_in_out:
        params["ws"] = 0.2 * jax.random.normal(jax.random.fold_in(key, 12),
                                               (out_planes, in_planes, 1, 1),
                                               jnp.float32)
    return params


# ----------------------------------- main ------------------------------------

if __name__ == "__main__":
    key = jax.random.PRNGKey(0)

    # Config A: in_planes != out_planes, stride 2 (exercises the convShortcut path).
    N, Cin, Cout, H, W, stride = 2, 4, 8, 16, 16, 2
    x = jax.random.normal(jax.random.fold_in(key, 0), (N, Cin, H, W), jnp.float32)
    params_a = make_params(jax.random.fold_in(key, 1), Cin, Cout, equal_in_out=False)
    prep_a = prepare_block_params(params_a, stride, equal_in_out=False)
    out_a = jax.block_until_ready(basic_block_forward(x, prep_a))
    ref_a = jax.block_until_ready(ref_forward(x, params_a, stride, False))
    assert out_a.shape == (N, Cout, H // stride, W // stride), out_a.shape
    err_a = float(jnp.max(jnp.abs(out_a - ref_a)))
    assert jnp.allclose(out_a, ref_a, atol=1e-2, rtol=1e-2), f"config A mismatch {err_a}"

    # Config B: in_planes == out_planes, stride 1 (identity shortcut path).
    params_b = make_params(jax.random.fold_in(key, 2), Cin, Cin, equal_in_out=True)
    prep_b = prepare_block_params(params_b, 1, equal_in_out=True)
    out_b = jax.block_until_ready(basic_block_forward(x, prep_b))
    ref_b = jax.block_until_ready(ref_forward(x, params_b, 1, True))
    assert out_b.shape == (N, Cin, H, W), out_b.shape
    err_b = float(jnp.max(jnp.abs(out_b - ref_b)))
    assert jnp.allclose(out_b, ref_b, atol=1e-2, rtol=1e-2), f"config B mismatch {err_b}"

    print("KERNEL_OK")
</pallas_src>

<mosaic_0001>
module attributes {stable_mosaic.version = 11 : i64} {
  func.func @_bnrelu_kernel(%arg0: i32, %arg1: memref<16x128xbf16, #tpu.memory_space<vmem>>, %arg2: memref<1x128xf32, #tpu.memory_space<vmem>>, %arg3: memref<1x128xf32, #tpu.memory_space<vmem>>, %arg4: memref<16x128xbf16, #tpu.memory_space<vmem>>) attributes {dimension_semantics = [#tpu.dimension_semantics<parallel>], iteration_bounds = array<i64: 1>, scalar_prefetch = 0 : i64, scratch_operands = 0 : i64, tpu.core_type = #tpu.core_type<tc>, window_params = [{transform_indices = @transform_0, window_bounds = array<i64: 16, 128>}, {pipeline_mode = #tpu.pipeline_mode<synchronous>, transform_indices = @transform_1, window_bounds = array<i64: 1, 128>}, {pipeline_mode = #tpu.pipeline_mode<synchronous>, transform_indices = @transform_2, window_bounds = array<i64: 1, 128>}, {transform_indices = @transform_3, window_bounds = array<i64: 16, 128>}]} {
    %c0 = arith.constant 0 : index
    %c0_0 = arith.constant 0 : index
    %0 = vector.load %arg1[%c0, %c0_0] : memref<16x128xbf16, #tpu.memory_space<vmem>>, vector<16x128xbf16>
    %1 = arith.extf %0 : vector<16x128xbf16> to vector<16x128xf32>
    %c0_1 = arith.constant 0 : index
    %c0_2 = arith.constant 0 : index
    %2 = vector.load %arg2[%c0_1, %c0_2] : memref<1x128xf32, #tpu.memory_space<vmem>>, vector<1x128xf32>
    %3 = vector.broadcast %2 : vector<1x128xf32> to vector<16x128xf32>
    %4 = arith.mulf %1, %3 : vector<16x128xf32>
    %c0_3 = arith.constant 0 : index
    %c0_4 = arith.constant 0 : index
    %5 = vector.load %arg3[%c0_3, %c0_4] : memref<1x128xf32, #tpu.memory_space<vmem>>, vector<1x128xf32>
    %6 = vector.broadcast %5 : vector<1x128xf32> to vector<16x128xf32>
    %7 = arith.addf %4, %6 : vector<16x128xf32>
    %cst = arith.constant 0.000000e+00 : f32
    %8 = vector.broadcast %cst : f32 to vector<16x128xf32>
    %9 = arith.maximumf %7, %8 : vector<16x128xf32>
    %10 = arith.truncf %9 : vector<16x128xf32> to vector<16x128xbf16>
    %c0_5 = arith.constant 0 : index
    %c0_6 = arith.constant 0 : index
    %11 = vector.load %arg4[%c0_5, %c0_6] : memref<16x128xbf16, #tpu.memory_space<vmem>>, vector<16x128xbf16>
    tpu.vector_store %arg4[%c0_5, %c0_6], %10 {strides = array<i32>} : memref<16x128xbf16, #tpu.memory_space<vmem>>, vector<16x128xbf16>,
    return
  }
  func.func @transform_0(%arg0: i32) -> (i32, i32) {
    %c0_i32 = arith.constant 0 : i32
    %c0_i32_0 = arith.constant 0 : i32
    return %arg0, %c0_i32 : i32, i32
  }
  func.func @transform_1(%arg0: i32) -> (i32, i32) {
    %c0_i32 = arith.constant 0 : i32
    %c0_i32_0 = arith.constant 0 : i32
    %c0_i32_1 = arith.constant 0 : i32
    return %c0_i32, %c0_i32_0 : i32, i32
  }
  func.func @transform_2(%arg0: i32) -> (i32, i32) {
    %c0_i32 = arith.constant 0 : i32
    %c0_i32_0 = arith.constant 0 : i32
    %c0_i32_1 = arith.constant 0 : i32
    return %c0_i32, %c0_i32_0 : i32, i32
  }
  func.func @transform_3(%arg0: i32) -> (i32, i32) {
    %c0_i32 = arith.constant 0 : i32
    %c0_i32_0 = arith.constant 0 : i32
    return %arg0, %c0_i32 : i32, i32
  }
}

</mosaic_0001>

<llo_original>
// kernel: tpu_custom_call.1
$region0: #{tpu_custom_call.1}
  #allocation0 [shape = 'u32[]', space=smem, size = 0x4, offset = 0x4, fixed_abs, tag = 'smem constant byte address 0x4 - core index']
  #allocation1 [shape = 'u32[144,128]{1,0:T(1,128)}', space=vmem, size = 0x12000, scoped, tag = 'internal scratch']
  %s0 = inlined_call_operand.hbm [shape: bf16[16,128], index: 0, kind: input, shape index: {}]
  %s1 = inlined_call_operand.vmem [shape: f32[1,128], index: 1, kind: input, shape index: {}]
  %s2 = inlined_call_operand.vmem [shape: f32[1,128], index: 2, kind: input, shape index: {}]
  %s3 = inlined_call_operand.hbm [shape: bf16[16,128], index: 3, kind: output, shape index: {}]
  %s4 = sld [smem:[#allocation0]]
  $region26: #{tpu_custom_call.1} parent=0
    _
  %s6 = ssub.s32 1, %s4
  %s7 = scalar_select 0, %s6, %s4
  $region1: #{tpu_custom_call.1} parent=0
    #allocation2 [shape = 'u8[4096]{0}', space=vmem, size = 0x1000, scoped, tag = 'input window, operand 0, single buffered']
    #allocation3 [shape = 's32[1]{0}', space=sflag, size = 0x4, scoped, tag = 'scoped memory for tpu_custom_call.1']
    #allocation4 [shape = 's32[1]{0}', space=sflag, size = 0x4, scoped, tag = 'scoped memory for tpu_custom_call.1']
    #allocation5 [shape = 'u8[4096]{0}', space=vmem, size = 0x1000, scoped, tag = 'output window, operand 0, single buffered']
    %8 = vsyncpa [#allocation3], 0
    %9 = vsyncpa [#allocation4], 0
    // Predicated region
    $region2: #{tpu_custom_call.1} parent=1 // pred_check
      _
    $region3: #{tpu_custom_call.1} parent=1 // pred_check_branch
      %11 = sbr.rel (0) target = $region5
    $region4: #{tpu_custom_call.1} parent=1 // pred_region
      %s13 = ssub.s32 128, 128
      %14 = vsyncadd [#allocation3], %s13
      %s15 = sshll.u32 [#allocation2], 4
      %s16 = int_to_ptr.vmem [resolvable:$true] %s15
      %21 = dma.hbm_to_vmem [thread:$0]  %s0, 128, %s16, [#allocation3], 64, 64, 4
    $region5: #{tpu_custom_call.1} parent=1 // pred_fallthru
      _
    // Predicated region
    $region6: #{tpu_custom_call.1} parent=1 // pred_check
      _
    $region7: #{tpu_custom_call.1} parent=1 // pred_check_branch
      %23 = sbr.rel (0) target = $region9
    $region8: #{tpu_custom_call.1} parent=1 // pred_region
      _
    $region9: #{tpu_custom_call.1} parent=1 // pred_fallthru
      _
    // Predicated region
    $region10: #{tpu_custom_call.1} parent=1 // pred_check
      _
    $region11: #{tpu_custom_call.1} parent=1 // pred_check_branch
      %25 = sbr.rel (0) target = $region13
    $region12: #{tpu_custom_call.1} parent=1 // pred_region
      _
    $region13: #{tpu_custom_call.1} parent=1 // pred_fallthru
      _
    // Predicated region
    $region14: #{tpu_custom_call.1} parent=1 // pred_check
      _
    $region15: #{tpu_custom_call.1} parent=1 // pred_check_branch
      %27 = sbr.rel (0) target = $region17
    $region16: #{tpu_custom_call.1} parent=1 // pred_region
      %28 = dma.done [#allocation3], 128
    $region17: #{tpu_custom_call.1} parent=1 // pred_fallthru
      _
    %v29 = vld [vmem:[#allocation2] sm:$0xf]
    %v30 = vld [vmem:[#allocation2 + $0x4] sm:$0xf]
    %v31 = vunpack.c.l.bf16 %v29
    %v32 = vunpack.c.l.bf16 %v30
    %v33 = vld [vmem:[%s1] sm:$0x1]
    %v35 = vlaneseq
    %v36 = vshrl.u32 %v35, 7
    %v37 = vsub.s32 0, %v36
    %v38 = vrot.slane %v33, %v37
    %v40 = vmul.f32 %v31, %v38
    %v41 = vmul.f32 %v32, %v38
    %v42 = vld [vmem:[%s2] sm:$0x1]
    %v44 = vlaneseq
    %v45 = vshrl.u32 %v44, 7
    %v46 = vsub.s32 0, %v45
    %v47 = vrot.slane %v42, %v46
    %v49 = vadd.f32 %v40, %v47
    %v50 = vadd.f32 %v41, %v47
    %v51 = vmax.f32 %v49, 0.0
    %v52 = vmax.f32 %v50, 0.0
    %v53 = vpack.c.bf16 %v52, %v51
    %v55 = vunpack.c.l.b16 %v53
    %v56 = vunpack.c.h.b16 %v53
    %v57 = vpack.c.b16 %v55, %v55
    %v58 = vpack.c.b16 %v56, %v56
    %61 = vst [vmem:[#allocation5] sm:$0xf] %v57
    %62 = vst [vmem:[#allocation5 + $0x4] sm:$0xf] %v58
    // Predicated region
    $region18: #{tpu_custom_call.1} parent=1 // pred_check
      _
    $region19: #{tpu_custom_call.1} parent=1 // pred_check_branch
      %64 = sbr.rel (0) target = $region21
    $region20: #{tpu_custom_call.1} parent=1 // pred_region
      %s66 = ssub.s32 128, 128
      %67 = vsyncadd [#allocation4], %s66
      %s68 = sshll.u32 [#allocation5], 4
      %s69 = int_to_ptr.vmem [resolvable:$true] %s68
      %74 = dma.vmem_to_hbm [thread:$0]  %s69, 128, %s3, [#allocation4], 64, 64, 4
    $region21: #{tpu_custom_call.1} parent=1 // pred_fallthru
      _
    // Predicated region
    $region22: #{tpu_custom_call.1} parent=1 // pred_check
      _
    $region23: #{tpu_custom_call.1} parent=1 // pred_check_branch
      %76 = sbr.rel (0) target = $region25
    $region24: #{tpu_custom_call.1} parent=1 // pred_region
      %77 = dma.done [#allocation4], 128
    $region25: #{tpu_custom_call.1} parent=1 // pred_fallthru
      _
    %78 = vsyncpa [#allocation3], 1
    %79 = vsyncpa [#allocation4], 1

</llo_original>
